<compile_context>
chip_gen: v7x
topology: tpu7x:2x2x1
jax: 0.10.0
libtpu: 0.0.40
codegen_flags: <defaults>
</compile_context>

<pallas_src>
import math

import jax
import jax.numpy as jnp
from jax import lax
from jax.experimental import pallas as pl
from jax.experimental.pallas import tpu as pltpu


# ----------------------------------------------------------------------------
# Pallas kernel: per-batch crop + bilinear resize (+ h-flip) on the MXU
# ----------------------------------------------------------------------------
def _warp_kernel(params_ref, x_ref, o_ref, tmp_ref):
    """One batch element: o[0] = [Wy @ x[c] for all c] @ Wx^T, fused over C."""
    b = pl.program_id(0)
    _, C, H, W = x_ref.shape          # x block   : (1, C, H, W)
    S = o_ref.shape[2]                # out block : (1, C*S, S)

    # integer-valued crop parameters from the flat SMEM-prefetched table
    base = 5 * b
    y0 = params_ref[base + 0].astype(jnp.float32)
    hc = params_ref[base + 1].astype(jnp.float32)
    x0 = params_ref[base + 2].astype(jnp.float32)
    wc = params_ref[base + 3].astype(jnp.float32)
    flip_f = params_ref[base + 4].astype(jnp.float32)        # 0.0 or 1.0

    denom = float(max(S - 1, 1))

    # ---- bilinear (align_corners=True) weights via the hat function ---------
    # y-weights, shape (S, H): row = output row index, col = input row index.
    col_y = lax.broadcasted_iota(jnp.int32, (S, H), 1).astype(jnp.float32)
    j_y = lax.broadcasted_iota(jnp.int32, (S, H), 0).astype(jnp.float32)
    pos_y = jnp.clip(y0 + j_y * (hc - 1.0) / denom, 0.0, float(H - 1))
    wy = jnp.maximum(0.0, 1.0 - jnp.abs(col_y - pos_y)).astype(jnp.bfloat16)

    # x-weights built ALREADY TRANSPOSED, shape (W, S):
    #   row = input col index, col = output col index.
    col_x = lax.broadcasted_iota(jnp.int32, (W, S), 0).astype(jnp.float32)
    j_x = lax.broadcasted_iota(jnp.int32, (W, S), 1).astype(jnp.float32)
    # fold horizontal flip into the x weights: j -> (S-1-j) when flipped
    j_x = j_x + flip_f * ((S - 1.0) - 2.0 * j_x)
    pos_x = jnp.clip(x0 + j_x * (wc - 1.0) / denom, 0.0, float(W - 1))
    wx_t = jnp.maximum(0.0, 1.0 - jnp.abs(col_x - pos_x)).astype(jnp.bfloat16)

    # ---- stage 1: per-channel row resampling into a (C*S, W) bf16 scratch ---
    # C is small and static -> unrolled; per-iteration live values are tiny
    # (one (S, W) f32 tile) so a static Python loop does not blow vregs.
    for c in range(C):
        plane = x_ref[0, c].astype(jnp.bfloat16)                        # (H, W)
        t = jnp.dot(wy, plane, preferred_element_type=jnp.float32)      # (S, W)
        tmp_ref[c * S:(c + 1) * S, :] = t.astype(jnp.bfloat16)

    # ---- stage 2: ONE fused column-resample matmul + ONE full-slab store ----
    out = jnp.dot(tmp_ref[...], wx_t,
                  preferred_element_type=jnp.float32)                   # (C*S, S)
    o_ref[0] = out.astype(o_ref.dtype)


def _warp_pallas(params, x, size):
    B, C, H, W = x.shape
    out_dtype = x.dtype                    # bf16 in -> bf16 out (mem-bound win)

    # Block-footprint-aware scoped-VMEM limit (v5e default is only 16 MiB);
    # capped at v7x's 64 MiB physical VMEM.
    in_bytes = C * H * W * x.dtype.itemsize
    out_bytes = C * size * size * jnp.dtype(out_dtype).itemsize
    scratch_bytes = C * size * W * 2                       # bf16 stage-1 slab
    weight_bytes = (size * H + W * size) * 4
    footprint = 2 * (in_bytes + out_bytes) + scratch_bytes + weight_bytes
    vmem_limit = int(min(max(footprint + (8 << 20), 32 << 20), 64 << 20))

    return pl.pallas_call(
        _warp_kernel,
        out_shape=jax.ShapeDtypeStruct((B, C * size, size), out_dtype),
        grid_spec=pltpu.PrefetchScalarGridSpec(
            num_scalar_prefetch=1,
            grid=(B,),
            in_specs=[pl.BlockSpec((1, C, H, W), lambda b, p: (b, 0, 0, 0))],
            out_specs=pl.BlockSpec((1, C * size, size), lambda b, p: (b, 0, 0)),
            scratch_shapes=[pltpu.VMEM((C * size, W), jnp.bfloat16)],
        ),
        compiler_params=pltpu.CompilerParams(
            dimension_semantics=("parallel",),
            vmem_limit_bytes=vmem_limit),
    )(params, x)


# ----------------------------------------------------------------------------
# Wrapper: parameter sampling + transform-matrix glue (plain JAX, tiny)
# ----------------------------------------------------------------------------
def random_resized_crop_hflip(x, key, *, size, aug_scale, aug_ratio,
                              same_on_batch, h_flip):
    """Forward pass of RandomResizedCropHFilp.  Returns (x_aug, transmat)."""
    B, C, H, W = x.shape
    nb = 1 if same_on_batch else B
    k_sc, k_ra, k_x, k_y, k_fl = jax.random.split(key, 5)

    # ---- sample crop parameters (per-sample unless same_on_batch) ----------
    # TODO(synk): kornia uses a rejection/retry scheme for crop-size sampling;
    # this is a single-attempt log-uniform-aspect sampler with clamping.
    area = float(H * W)
    sc = jax.random.uniform(k_sc, (nb,), minval=aug_scale[0], maxval=aug_scale[1])
    logr = jax.random.uniform(k_ra, (nb,),
                              minval=math.log(aug_ratio[0]),
                              maxval=math.log(aug_ratio[1]))
    aspect = jnp.exp(logr)
    target = sc * area
    wc = jnp.clip(jnp.round(jnp.sqrt(target * aspect)), 1.0, float(W))
    hc = jnp.clip(jnp.round(jnp.sqrt(target / aspect)), 1.0, float(H))
    x0 = jnp.floor(jax.random.uniform(k_x, (nb,)) * (W - wc + 1.0))
    y0 = jnp.floor(jax.random.uniform(k_y, (nb,)) * (H - hc + 1.0))
    do_flip = (h_flip is not None) and (h_flip > 0.0)
    if do_flip:
        flip = jax.random.uniform(k_fl, (nb,)) < h_flip
    else:
        flip = jnp.zeros((nb,), dtype=bool)

    if same_on_batch:
        wc = jnp.broadcast_to(wc, (B,)); hc = jnp.broadcast_to(hc, (B,))
        x0 = jnp.broadcast_to(x0, (B,)); y0 = jnp.broadcast_to(y0, (B,))
        flip = jnp.broadcast_to(flip, (B,))

    # all parameters are integer-valued -> ONE flat int32 scalar-prefetch table
    # (1-D SMEM padding is next-pow2 bytes, not a (8,128)-word slab)
    params = jnp.stack([y0, hc, x0, wc, flip.astype(jnp.float32)],
                       axis=-1).astype(jnp.int32).reshape(-1)          # (B*5,)

    # ---- hot path: fused crop+resize(+flip) warp kernel ---------------------
    warped = _warp_pallas(params, x, size)                             # (B, C*S, S)
    x_out = warped.reshape(B, C, size, size)

    # ---- transformation matrix ----------------------------------------------
    # pixel-space crop transform (src pixel -> dst pixel of size x size image)
    sden = float(max(size - 1, 1))
    sx = (size - 1.0) / jnp.maximum(wc - 1.0, 1.0)
    sy = (size - 1.0) / jnp.maximum(hc - 1.0, 1.0)
    z = jnp.zeros_like(sx)
    o = jnp.ones_like(sx)
    m_pix = jnp.stack([
        jnp.stack([sx, z, -x0 * sx], axis=-1),
        jnp.stack([z, sy, -y0 * sy], axis=-1),
        jnp.stack([z, z, o], axis=-1),
    ], axis=-2)                                                        # (B,3,3)

    # kornia.geometry.warp.normalize_homography((H,W) -> (size,size))
    n_dst = jnp.array([[2.0 / sden, 0.0, -1.0],
                       [0.0, 2.0 / sden, -1.0],
                       [0.0, 0.0, 1.0]], dtype=jnp.float32)
    n_src_inv = jnp.array([[(W - 1) / 2.0, 0.0, (W - 1) / 2.0],
                           [0.0, (H - 1) / 2.0, (H - 1) / 2.0],
                           [0.0, 0.0, 1.0]], dtype=jnp.float32)
    m_norm = jnp.einsum('ij,bjk,kl->bil', n_dst, m_pix, n_src_inv)

    if not do_flip:
        return x_out, m_norm

    # hflip transform with translation zeroed ([:,0,2] = 0), then bmm compose.
    # (~100 FLOPs -> plain einsum; a pallas_call here would be pure overhead)
    s = jnp.where(flip, -1.0, 1.0).astype(jnp.float32)
    f_mat = jnp.stack([
        jnp.stack([s, z, z], axis=-1),
        jnp.stack([z, o, z], axis=-1),
        jnp.stack([z, z, o], axis=-1),
    ], axis=-2)                                                        # (B,3,3)
    transmat = jnp.einsum('bij,bjk->bik', f_mat, m_norm)
    return x_out, transmat


# ----------------------------------------------------------------------------
if __name__ == "__main__":
    opt = dict(size=8,
               aug_scale=(0.3, 1.0),
               aug_ratio=(0.75, 1.3333),
               same_on_batch=False,
               h_flip=0.5)

    key = jax.random.PRNGKey(0)
    k_data, k_aug = jax.random.split(key)
    # Images kept in bf16 in HBM: halves the input DMA of this mem-bound kernel
    # (and the output follows the input dtype, halving writeback too).
    x = jax.random.normal(k_data, (2, 4, 16, 16), dtype=jnp.float32)
    x = x.astype(jnp.bfloat16)

    x_out, transmat = random_resized_crop_hflip(
        x, k_aug,
        size=opt['size'],
        aug_scale=opt['aug_scale'],
        aug_ratio=opt['aug_ratio'],
        same_on_batch=opt['same_on_batch'],
        h_flip=opt['h_flip'])

    jax.block_until_ready(x_out)
    jax.block_until_ready(transmat)
    assert x_out.shape == (2, 4, opt['size'], opt['size'])
    assert x_out.dtype == jnp.bfloat16
    assert transmat.shape == (2, 3, 3)
    print("KERNEL_OK")
</pallas_src>

<mosaic_0001>
module attributes {stable_mosaic.version = 11 : i64} {
  func.func @_warp_kernel(%arg0: i32, %arg1: memref<10xi32, #tpu.memory_space<smem>>, %arg2: memref<1x4x16x16xbf16, #tpu.memory_space<vmem>>, %arg3: memref<1x32x8xbf16, #tpu.memory_space<vmem>>, %arg4: memref<32x16xbf16, #tpu.memory_space<vmem>>) attributes {dimension_semantics = [#tpu.dimension_semantics<parallel>], iteration_bounds = array<i64: 2>, scalar_prefetch = 1 : i64, scratch_operands = 1 : i64, tpu.core_type = #tpu.core_type<tc>, window_params = [{transform_indices = @transform_0, window_bounds = array<i64: 1, 4, 16, 16>}, {transform_indices = @transform_1, window_bounds = array<i64: 1, 32, 8>}]} {
    %c5_i32 = arith.constant 5 : i32
    %0 = arith.muli %c5_i32, %arg0 : i32
    %c0_i32 = arith.constant 0 : i32
    %1 = arith.addi %0, %c0_i32 : i32
    %2 = arith.index_cast %1 : i32 to index
    %3 = memref.load %arg1[%2] : memref<10xi32, #tpu.memory_space<smem>>
    %4 = arith.sitofp %3 : i32 to f32
    %c1_i32 = arith.constant 1 : i32
    %5 = arith.addi %0, %c1_i32 : i32
    %6 = arith.index_cast %5 : i32 to index
    %7 = memref.load %arg1[%6] : memref<10xi32, #tpu.memory_space<smem>>
    %8 = arith.sitofp %7 : i32 to f32
    %c2_i32 = arith.constant 2 : i32
    %9 = arith.addi %0, %c2_i32 : i32
    %10 = arith.index_cast %9 : i32 to index
    %11 = memref.load %arg1[%10] : memref<10xi32, #tpu.memory_space<smem>>
    %12 = arith.sitofp %11 : i32 to f32
    %c3_i32 = arith.constant 3 : i32
    %13 = arith.addi %0, %c3_i32 : i32
    %14 = arith.index_cast %13 : i32 to index
    %15 = memref.load %arg1[%14] : memref<10xi32, #tpu.memory_space<smem>>
    %16 = arith.sitofp %15 : i32 to f32
    %c4_i32 = arith.constant 4 : i32
    %17 = arith.addi %0, %c4_i32 : i32
    %18 = arith.index_cast %17 : i32 to index
    %19 = memref.load %arg1[%18] : memref<10xi32, #tpu.memory_space<smem>>
    %20 = arith.sitofp %19 : i32 to f32
    %21 = tpu.iota {dimensions = array<i32: 1>} : vector<8x16xi32>
    %22 = arith.sitofp %21 : vector<8x16xi32> to vector<8x16xf32>
    %23 = tpu.iota {dimensions = array<i32: 0>} : vector<8x16xi32>
    %24 = arith.sitofp %23 : vector<8x16xi32> to vector<8x16xf32>
    %cst = arith.constant 1.000000e+00 : f32
    %25 = arith.subf %8, %cst : f32
    %26 = vector.broadcast %25 : f32 to vector<8x16xf32>
    %27 = arith.mulf %24, %26 : vector<8x16xf32>
    %cst_0 = arith.constant 7.000000e+00 : f32
    %28 = vector.broadcast %cst_0 : f32 to vector<8x16xf32>
    %29 = arith.divf %27, %28 : vector<8x16xf32>
    %30 = vector.broadcast %4 : f32 to vector<8x16xf32>
    %31 = arith.addf %30, %29 : vector<8x16xf32>
    %cst_1 = arith.constant 0.000000e+00 : f32
    %cst_2 = arith.constant 1.500000e+01 : f32
    %32 = vector.broadcast %cst_1 : f32 to vector<8x16xf32>
    %33 = arith.maximumf %32, %31 : vector<8x16xf32>
    %34 = vector.broadcast %cst_2 : f32 to vector<8x16xf32>
    %35 = arith.minimumf %34, %33 : vector<8x16xf32>
    %36 = arith.subf %22, %35 : vector<8x16xf32>
    %37 = math.absf %36 : vector<8x16xf32>
    %cst_3 = arith.constant 1.000000e+00 : f32
    %38 = vector.broadcast %cst_3 : f32 to vector<8x16xf32>
    %39 = arith.subf %38, %37 : vector<8x16xf32>
    %cst_4 = arith.constant 0.000000e+00 : f32
    %40 = vector.broadcast %cst_4 : f32 to vector<8x16xf32>
    %41 = arith.maximumf %40, %39 : vector<8x16xf32>
    %42 = arith.truncf %41 : vector<8x16xf32> to vector<8x16xbf16>
    %43 = tpu.iota {dimensions = array<i32: 0>} : vector<16x8xi32>
    %44 = arith.sitofp %43 : vector<16x8xi32> to vector<16x8xf32>
    %45 = tpu.iota {dimensions = array<i32: 1>} : vector<16x8xi32>
    %46 = arith.sitofp %45 : vector<16x8xi32> to vector<16x8xf32>
    %cst_5 = arith.constant 2.000000e+00 : f32
    %47 = vector.broadcast %cst_5 : f32 to vector<16x8xf32>
    %48 = arith.mulf %47, %46 : vector<16x8xf32>
    %cst_6 = arith.constant 7.000000e+00 : f32
    %49 = vector.broadcast %cst_6 : f32 to vector<16x8xf32>
    %50 = arith.subf %49, %48 : vector<16x8xf32>
    %51 = vector.broadcast %20 : f32 to vector<16x8xf32>
    %52 = arith.mulf %51, %50 : vector<16x8xf32>
    %53 = arith.addf %46, %52 : vector<16x8xf32>
    %cst_7 = arith.constant 1.000000e+00 : f32
    %54 = arith.subf %16, %cst_7 : f32
    %55 = vector.broadcast %54 : f32 to vector<16x8xf32>
    %56 = arith.mulf %53, %55 : vector<16x8xf32>
    %cst_8 = arith.constant 7.000000e+00 : f32
    %57 = vector.broadcast %cst_8 : f32 to vector<16x8xf32>
    %58 = arith.divf %56, %57 : vector<16x8xf32>
    %59 = vector.broadcast %12 : f32 to vector<16x8xf32>
    %60 = arith.addf %59, %58 : vector<16x8xf32>
    %cst_9 = arith.constant 0.000000e+00 : f32
    %cst_10 = arith.constant 1.500000e+01 : f32
    %61 = vector.broadcast %cst_9 : f32 to vector<16x8xf32>
    %62 = arith.maximumf %61, %60 : vector<16x8xf32>
    %63 = vector.broadcast %cst_10 : f32 to vector<16x8xf32>
    %64 = arith.minimumf %63, %62 : vector<16x8xf32>
    %65 = arith.subf %44, %64 : vector<16x8xf32>
    %66 = math.absf %65 : vector<16x8xf32>
    %cst_11 = arith.constant 1.000000e+00 : f32
    %67 = vector.broadcast %cst_11 : f32 to vector<16x8xf32>
    %68 = arith.subf %67, %66 : vector<16x8xf32>
    %cst_12 = arith.constant 0.000000e+00 : f32
    %69 = vector.broadcast %cst_12 : f32 to vector<16x8xf32>
    %70 = arith.maximumf %69, %68 : vector<16x8xf32>
    %71 = arith.truncf %70 : vector<16x8xf32> to vector<16x8xbf16>
    %c0 = arith.constant 0 : index
    %c0_13 = arith.constant 0 : index
    %c0_14 = arith.constant 0 : index
    %c0_15 = arith.constant 0 : index
    %72 = vector.load %arg2[%c0, %c0_13, %c0_14, %c0_15] : memref<1x4x16x16xbf16, #tpu.memory_space<vmem>>, vector<1x1x16x16xbf16>
    %73 = vector.shape_cast %72 : vector<1x1x16x16xbf16> to vector<16x16xbf16>
    %cst_16 = arith.constant dense<0.000000e+00> : vector<8x16xf32>
    %74 = tpu.matmul %42, %73, %cst_16 {dimension_numbers = #tpu.dot_dimension_numbers<[1], [0], [0], [1], [0, 0, 1, 1], [], []>} : vector<8x16xbf16>, vector<16x16xbf16>, vector<8x16xf32> -> vector<8x16xf32>
    %75 = arith.truncf %74 : vector<8x16xf32> to vector<8x16xbf16>
    %c0_17 = arith.constant 0 : index
    %c0_18 = arith.constant 0 : index
    %76 = vector.load %arg4[%c0_17, %c0_18] : memref<32x16xbf16, #tpu.memory_space<vmem>>, vector<8x16xbf16>
    tpu.vector_store %arg4[%c0_17, %c0_18], %75 {strides = array<i32>} : memref<32x16xbf16, #tpu.memory_space<vmem>>, vector<8x16xbf16>,
    %c0_19 = arith.constant 0 : index
    %c1 = arith.constant 1 : index
    %c0_20 = arith.constant 0 : index
    %c0_21 = arith.constant 0 : index
    %77 = vector.load %arg2[%c0_19, %c1, %c0_20, %c0_21] : memref<1x4x16x16xbf16, #tpu.memory_space<vmem>>, vector<1x1x16x16xbf16>
    %78 = vector.shape_cast %77 : vector<1x1x16x16xbf16> to vector<16x16xbf16>
    %cst_22 = arith.constant dense<0.000000e+00> : vector<8x16xf32>
    %79 = tpu.matmul %42, %78, %cst_22 {dimension_numbers = #tpu.dot_dimension_numbers<[1], [0], [0], [1], [0, 0, 1, 1], [], []>} : vector<8x16xbf16>, vector<16x16xbf16>, vector<8x16xf32> -> vector<8x16xf32>
    %80 = arith.truncf %79 : vector<8x16xf32> to vector<8x16xbf16>
    %c8 = arith.constant 8 : index
    %c0_23 = arith.constant 0 : index
    %81 = vector.load %arg4[%c8, %c0_23] : memref<32x16xbf16, #tpu.memory_space<vmem>>, vector<8x16xbf16>
    tpu.vector_store %arg4[%c8, %c0_23], %80 {strides = array<i32>} : memref<32x16xbf16, #tpu.memory_space<vmem>>, vector<8x16xbf16>,
    %c0_24 = arith.constant 0 : index
    %c2 = arith.constant 2 : index
    %c0_25 = arith.constant 0 : index
    %c0_26 = arith.constant 0 : index
    %82 = vector.load %arg2[%c0_24, %c2, %c0_25, %c0_26] : memref<1x4x16x16xbf16, #tpu.memory_space<vmem>>, vector<1x1x16x16xbf16>
    %83 = vector.shape_cast %82 : vector<1x1x16x16xbf16> to vector<16x16xbf16>
    %cst_27 = arith.constant dense<0.000000e+00> : vector<8x16xf32>
    %84 = tpu.matmul %42, %83, %cst_27 {dimension_numbers = #tpu.dot_dimension_numbers<[1], [0], [0], [1], [0, 0, 1, 1], [], []>} : vector<8x16xbf16>, vector<16x16xbf16>, vector<8x16xf32> -> vector<8x16xf32>
    %85 = arith.truncf %84 : vector<8x16xf32> to vector<8x16xbf16>
    %c16 = arith.constant 16 : index
    %c0_28 = arith.constant 0 : index
    %86 = vector.load %arg4[%c16, %c0_28] : memref<32x16xbf16, #tpu.memory_space<vmem>>, vector<8x16xbf16>
    tpu.vector_store %arg4[%c16, %c0_28], %85 {strides = array<i32>} : memref<32x16xbf16, #tpu.memory_space<vmem>>, vector<8x16xbf16>,
    %c0_29 = arith.constant 0 : index
    %c3 = arith.constant 3 : index
    %c0_30 = arith.constant 0 : index
    %c0_31 = arith.constant 0 : index
    %87 = vector.load %arg2[%c0_29, %c3, %c0_30, %c0_31] : memref<1x4x16x16xbf16, #tpu.memory_space<vmem>>, vector<1x1x16x16xbf16>
    %88 = vector.shape_cast %87 : vector<1x1x16x16xbf16> to vector<16x16xbf16>
    %cst_32 = arith.constant dense<0.000000e+00> : vector<8x16xf32>
    %89 = tpu.matmul %42, %88, %cst_32 {dimension_numbers = #tpu.dot_dimension_numbers<[1], [0], [0], [1], [0, 0, 1, 1], [], []>} : vector<8x16xbf16>, vector<16x16xbf16>, vector<8x16xf32> -> vector<8x16xf32>
    %90 = arith.truncf %89 : vector<8x16xf32> to vector<8x16xbf16>
    %c24 = arith.constant 24 : index
    %c0_33 = arith.constant 0 : index
    %91 = vector.load %arg4[%c24, %c0_33] : memref<32x16xbf16, #tpu.memory_space<vmem>>, vector<8x16xbf16>
    tpu.vector_store %arg4[%c24, %c0_33], %90 {strides = array<i32>} : memref<32x16xbf16, #tpu.memory_space<vmem>>, vector<8x16xbf16>,
    %c0_34 = arith.constant 0 : index
    %c0_35 = arith.constant 0 : index
    %92 = vector.load %arg4[%c0_34, %c0_35] : memref<32x16xbf16, #tpu.memory_space<vmem>>, vector<32x16xbf16>
    %cst_36 = arith.constant dense<0.000000e+00> : vector<32x8xf32>
    %93 = tpu.matmul %92, %71, %cst_36 {dimension_numbers = #tpu.dot_dimension_numbers<[1], [0], [0], [1], [0, 0, 1, 1], [], []>} : vector<32x16xbf16>, vector<16x8xbf16>, vector<32x8xf32> -> vector<32x8xf32>
    %94 = arith.truncf %93 : vector<32x8xf32> to vector<32x8xbf16>
    %c0_37 = arith.constant 0 : index
    %c0_38 = arith.constant 0 : index
    %c0_39 = arith.constant 0 : index
    %95 = vector.load %arg3[%c0_37, %c0_38, %c0_39] : memref<1x32x8xbf16, #tpu.memory_space<vmem>>, vector<1x32x8xbf16>
    %96 = vector.shape_cast %95 : vector<1x32x8xbf16> to vector<32x8xbf16>
    %97 = vector.shape_cast %94 : vector<32x8xbf16> to vector<1x32x8xbf16>
    tpu.vector_store %arg3[%c0_37, %c0_38, %c0_39], %97 {strides = array<i32>} : memref<1x32x8xbf16, #tpu.memory_space<vmem>>, vector<1x32x8xbf16>,
    return
  }
  func.func @transform_0(%arg0: i32, %arg1: memref<10xi32, #tpu.memory_space<smem>>) -> (i32, i32, i32, i32) {
    %c0_i32 = arith.constant 0 : i32
    %c0_i32_0 = arith.constant 0 : i32
    %c0_i32_1 = arith.constant 0 : i32
    %c0_i32_2 = arith.constant 0 : i32
    return %arg0, %c0_i32, %c0_i32_0, %c0_i32_1 : i32, i32, i32, i32
  }
  func.func @transform_1(%arg0: i32, %arg1: memref<10xi32, #tpu.memory_space<smem>>) -> (i32, i32, i32) {
    %c0_i32 = arith.constant 0 : i32
    %c0_i32_0 = arith.constant 0 : i32
    %c0_i32_1 = arith.constant 0 : i32
    return %arg0, %c0_i32, %c0_i32_0 : i32, i32, i32
  }
}

</mosaic_0001>

<llo_original>
// kernel: tpu_custom_call.1
$region0: #{tpu_custom_call.1}
  #allocation0 [shape = 'u32[]', space=smem, size = 0x4, offset = 0x4, fixed_abs, tag = 'smem constant byte address 0x4 - core index']
  #allocation1 [shape = 'u32[144,128]{1,0:T(1,128)}', space=vmem, size = 0x12000, scoped, tag = 'internal scratch']
  #allocation2 [shape = 'bf16[32,16]{1,0:T(16,128)(2,1)}', space=vmem, size = 0x2000, scoped, tag = 'scratch operand']
  #allocation3 [shape = 's32[1]{0}', space=sflag, size = 0x4, scoped, tag = 'scoped memory for tpu_custom_call.1']
  #allocation4 [shape = 'u8[512]{0}', space=smem, size = 0x200, scoped, tag = 'prefetched SMEM operand 0']
  %s0 = inlined_call_operand.hbm [shape: s32[10], index: 0, kind: input, shape index: {}]
  %s1 = inlined_call_operand.hbm [shape: bf16[2,4,16,16], index: 1, kind: input, shape index: {}]
  %s2 = inlined_call_operand.vmem [shape: bf16[2,32,8], index: 2, kind: output, shape index: {}]
  %s3 = sld [smem:[#allocation0]]
  $region41: #{tpu_custom_call.1} parent=0
    _
  %s5 = ssub.s32 1, %s3
  %s6 = scalar_select 0, %s5, %s3
  %8 = dma.hbm_to_smem %s0, 16, [#allocation4], [#allocation3]
  %9 = dma.done [#allocation3], 16
  %10 = sfence
  $region1: #{tpu_custom_call.1} parent=0
    #allocation5 [shape = 'u8[32768]{0}', space=vmem, size = 0x8000, scoped, tag = 'input window, operand 1']
    #allocation6 [shape = 's32[2]{0}', space=sflag, size = 0x8, scoped, tag = 'scoped memory for tpu_custom_call.1']
    %11 = vsyncpa [#allocation6], 0
    %s12 = scalar_lea.sflag [#allocation6], 1
    %13 = vsyncpa %s12, 0
    loop: start=0, step=1, limit=4
    $region2: #{tpu_custom_call.1} parent=1 // loop_pre_header
      _
    $region3: #{tpu_custom_call.1} parent=1 // loop_header
      %s15 = sphi 0, %s19
      %p16 = scmp.ge.s32.totalorder %s15, 4
      %s25 = sphi 0, %s27
      %s28 = sphi 0, %s25
      %s29 = sphi 0, %s28
      %s45 = sphi 0, %s29
      %s51 = sphi 0, %s53
      %s54 = sphi 0, %s51
      %s55 = sphi 0, %s54
      %s71 = sphi 0, %s55
    $region4: #{tpu_custom_call.1} parent=1 // loop_header_branch
      %18 = sbr.rel (%p16) target = $region8
    $region5: #{tpu_custom_call.1} parent=1 // loop_body
      %s20 = ssub.s32 %s15, 1
      %s21 = ssub.s32 %s15, 2
      %s22 = sadd.s32 %s15, 1
      %s23 = ssub.s32 %s15, %s22
      %p24 = scmp.eq.s32.totalorder %s23, 0
      %s26 = sadd.s32 %s25, 1
      %s27 = scalar_select %p24, %s25, %s26
      %p30 = pneg %p24
      %p31 = scmp.eq.s32.totalorder %s15, 1
      %p32 = por %p30, %p31
      %p33 = scmp.ne.s32.totalorder %s25, %s28
      %p34 = scmp.eq.s32.totalorder %s15, 0
      %p35 = por %p33, %p34
      %p36 = scmp.ne.s32.totalorder %s25, %s28
      %p37 = scmp.eq.s32.totalorder %s20, 1
      %p38 = por %p36, %p37
      %p39 = scmp.ne.s32.totalorder %s28, %s29
      %p40 = scmp.eq.s32.totalorder %s20, 0
      %p41 = por %p39, %p40
      %p42 = scmp.ne.s32.totalorder %s28, %s29
      %p43 = scmp.eq.s32.totalorder %s21, 1
      %p44 = por %p42, %p43
      %p46 = scmp.ne.s32.totalorder %s29, %s45
      %p47 = scmp.eq.s32.totalorder %s21, 0
      %p48 = por %p46, %p47
      %s49 = ssub.s32 %s15, %s22
      %p50 = scmp.eq.s32.totalorder %s49, 0
      %s52 = sadd.s32 %s51, 1
      %s53 = scalar_select %p50, %s51, %s52
      %p56 = pneg %p50
      %p57 = scmp.eq.s32.totalorder %s15, 1
      %p58 = por %p56, %p57
      %p59 = scmp.ne.s32.totalorder %s51, %s54
      %p60 = scmp.eq.s32.totalorder %s15, 0
      %p61 = por %p59, %p60
      %p62 = scmp.ne.s32.totalorder %s51, %s54
      %p63 = scmp.eq.s32.totalorder %s20, 1
      %p64 = por %p62, %p63
      %p65 = scmp.ne.s32.totalorder %s54, %s55
      %p66 = scmp.eq.s32.totalorder %s20, 0
      %p67 = por %p65, %p66
      %p68 = scmp.ne.s32.totalorder %s54, %s55
      %p69 = scmp.eq.s32.totalorder %s21, 1
      %p70 = por %p68, %p69
      %p72 = scmp.ne.s32.totalorder %s55, %s71
      %p73 = scmp.eq.s32.totalorder %s21, 0
      %p74 = por %p72, %p73
      %p75 = scmp.le.s32.totalorder 1, %s15
      %p76 = scmp.lt.s32.totalorder %s15, 3
      %p77 = pnand %p75, %p76
      %p78 = pneg %p77
      // Predicated region
      $region9: #{tpu_custom_call.1} parent=5 // pred_check
        _
      $region10: #{tpu_custom_call.1} parent=5 // pred_check_branch
        %80 = sbr.rel (%p77) target = $region12
      $region11: #{tpu_custom_call.1} parent=5 // pred_region
        %s81 = ssub.s32 %s15, 1
      $region12: #{tpu_custom_call.1} parent=5 // pred_fallthru
        _
      %p82 = scmp.lt.s32.totalorder %s15, 2
      // Predicated region
      $region13: #{tpu_custom_call.1} parent=5 // pred_check
        %p83 = pneg %p82
      $region14: #{tpu_custom_call.1} parent=5 // pred_check_branch
        %85 = sbr.rel (%p83) target = $region16
      $region15: #{tpu_custom_call.1} parent=5 // pred_region
        // Predicated region
        $region17: #{tpu_custom_call.1} parent=15 // pred_check
          %p86 = pneg %p35
        $region18: #{tpu_custom_call.1} parent=15 // pred_check_branch
          %88 = sbr.rel (%p86) target = $region20
        $region19: #{tpu_custom_call.1} parent=15 // pred_region
          %s89 = sand.u32 %s25, 1
          %s90 = scalar_lea.sflag [#allocation6], %s89
          %s91 = sand.u32 %s25, 1
          %s92 = smul.addr %s91, 32
          %s93 = scalar_lea.vmem [#allocation5], %s92
          %s95 = ssub.s32 512, 512
          %96 = vsyncadd %s90, %s95
          %s97 = smul.addr %s15, 8
          %s98 = smul.addr %s97, 64
          %s99 = scalar_lea.hbm %s1, %s98
          %s100 = sshll.u32 %s93, 4
          %s101 = int_to_ptr.vmem [resolvable:$true] %s100
          %106 = dma.hbm_to_vmem [thread:$0]  %s99, 512, %s101, %s90, 64, 64, 4
        $region20: #{tpu_custom_call.1} parent=15 // pred_fallthru
          _
      $region16: #{tpu_custom_call.1} parent=5 // pred_fallthru
        _
      %p107 = scmp.le.s32.totalorder 1, %s15
      %p108 = scmp.lt.s32.totalorder %s15, 3
      %p109 = pnand %p107, %p108
      %p110 = pneg %p109
      // Predicated region
      $region21: #{tpu_custom_call.1} parent=5 // pred_check
        _
      $region22: #{tpu_custom_call.1} parent=5 // pred_check_branch
        %112 = sbr.rel (%p109) target = $region24
      $region23: #{tpu_custom_call.1} parent=5 // pred_region
        %s113 = ssub.s32 %s15, 1
        %s114 = sand.u32 %s28, 1
        %s115 = scalar_lea.sflag [#allocation6], %s114
        %s116 = sand.u32 %s28, 1
        %s117 = smul.addr %s116, 32
        %s118 = scalar_lea.vmem [#allocation5], %s117
        // Predicated region
        $region25: #{tpu_custom_call.1} parent=23 // pred_check
          %p119 = pneg %p41
        $region26: #{tpu_custom_call.1} parent=23 // pred_check_branch
          %121 = sbr.rel (%p119) target = $region28
        $region27: #{tpu_custom_call.1} parent=23 // pred_region
          %122 = dma.done %s115, 512
        $region28: #{tpu_custom_call.1} parent=23 // pred_fallthru
          _
        %s123 = sand.u32 %s28, 1
        %s124 = scalar_lea.sflag [#allocation6], %s123
        %s125 = sand.u32 %s28, 1
        %s126 = smul.addr %s125, 32
        %s127 = scalar_lea.vmem [#allocation5], %s126
        %p128 = pneg %p41
        %p129 = pneg %p38
        %p130 = pneg %p67
        %p131 = pneg %p64
        %p132 = scmp.lt.s32.totalorder %s20, 1
        %s133 = scalar_select %p132, %s20, 1
        %s134 = smul.addr %s133, 4
        %s135 = smul.addr %s134, 4
        %s136 = scalar_lea.vmem %s2, %s135
        %p137 = scmp.lt.s32.totalorder %s20, 1
        %s138 = scalar_select %p137, %s20, 1
        %s139 = smul.addr %s138, 4
        %s140 = smul.addr %s139, 4
        %s141 = scalar_lea.vmem %s2, %s140
        %s143 = smul.u32 %s20, 5
        %s144 = sld [smem:[#allocation4 + %s143]]
        %s145 = scvt.s32.f32 %s144
        %s146 = sadd.s32 %s143, 1
        %s147 = sld [smem:[#allocation4 + %s146]]
        %s148 = scvt.s32.f32 %s147
        %s149 = sadd.s32 %s143, 2
        %s150 = sld [smem:[#allocation4 + %s149]]
        %s151 = scvt.s32.f32 %s150
        %s152 = sadd.s32 %s143, 3
        %s153 = sld [smem:[#allocation4 + %s152]]
        %s154 = scvt.s32.f32 %s153
        %s155 = sadd.s32 %s143, 4
        %s156 = sld [smem:[#allocation4 + %s155]]
        %s157 = scvt.s32.f32 %s156
        %v158 = vlaneseq
        %v159 = vand.u32 %v158, 127
        %v160 = vcvt.s32.f32 %v159
        %v161 = vlaneseq
        %v162 = vshrl.u32 %v161, 7
        %v163 = vcvt.s32.f32 %v162
        %s164 = ssub.f32 %s148, 1.0
        %v165 = vstv %s164
        %v166 = vmul.f32 %v163, %v165
        %v167 = vrcp.pop 7.0
        %v168 = vmul.f32 %v166, %v167
        %v169 = vstv %s145
        %v170 = vadd.f32 %v169, %v168
        %v171 = vmax.f32 %v170, 0.0
        %v172 = vmin.f32 %v171, 15.0
        %v173 = vsub.f32 %v160, %v172
        %v174 = vand.u32 2147483647, %v173
        %v175 = vsub.f32 1.0, %v174
        %v176 = vmax.f32 %v175, 0.0
        %v177 = vpack.c.bf16 %v176, %v176
        %v178 = vadd.s32 %v162, 8
        %v179 = vcvt.s32.f32 %v178
        %v180 = vmul.f32 %v160, 2.0
        %v181 = vsub.f32 7.0, %v180
        %v182 = vstv %s157
        %v183 = vmul.f32 %v182, %v181
        %v184 = vadd.f32 %v160, %v183
        %s185 = ssub.f32 %s154, 1.0
        %v186 = vstv %s185
        %v187 = vmul.f32 %v184, %v186
        %v188 = vmul.f32 %v187, %v167
        %v189 = vstv %s151
        %v190 = vadd.f32 %v189, %v188
        %v191 = vmax.f32 %v190, 0.0
        %v192 = vmin.f32 %v191, 15.0
        %v193 = vsub.f32 %v163, %v192
        %v194 = vsub.f32 %v179, %v192
        %v195 = vand.u32 2147483647, %v193
        %v196 = vand.u32 2147483647, %v194
        %v197 = vsub.f32 1.0, %v195
        %v198 = vsub.f32 1.0, %v196
        %v199 = vmax.f32 %v197, 0.0
        %v200 = vmax.f32 %v198, 0.0
        %v201 = vpack.c.bf16 %v200, %v199
        %v202 = vld [vmem:[%s118] sm:$0xf]
        %v203 = vld [vmem:[%s118 + $0x4] sm:$0xf]
        %v206 = vunpack.c.l.b16 %v202
        %v207 = vunpack.c.l.b16 %v203
        %v208 = vpack.c.b16 %v207, %v206
        %vm210 = vcmask 130048
        %v212 = vsel %vm210, %v177, 0
        %214 = vmatprep.subr.bf16.mxu0 0
        %215 = vmatpush1.bf16.msra.mxu0 %v208
        %216 = vmatprep.subr.bf16.mxu0 0
        %217 = vmatpush1.bf16.msra.mxu0 0
        %218 = vmatprep.subr.bf16.mxu0 0
        %219 = vmatpush1.bf16.msra.mxu0 0
        %220 = vmatprep.subr.bf16.mxu0 0
        %221 = vmatpush1.bf16.msra.mxu0 0
        %222 = vmatprep.subr.bf16.mxu0 0
        %223 = vmatpush1.bf16.msra.mxu0 0
        %224 = vmatprep.subr.bf16.mxu0 0
        %225 = vmatpush1.bf16.msra.mxu0 0
        %226 = vmatprep.subr.bf16.mxu0 0
        %227 = vmatpush1.bf16.msra.mxu0 0
        %228 = vmatprep.subr.bf16.mxu0 0
        %229 = vmatpush1.bf16.msra.mxu0 0
        %230 = vmatprep.subr.bf16.mxu0 0
        %231 = vmatpush1.bf16.msra.mxu0 0
        %232 = vmatprep.subr.bf16.mxu0 0
        %233 = vmatpush1.bf16.msra.mxu0 0
        %234 = vmatprep.subr.bf16.mxu0 0
        %235 = vmatpush1.bf16.msra.mxu0 0
        %236 = vmatprep.subr.bf16.mxu0 0
        %237 = vmatpush1.bf16.msra.mxu0 0
        %238 = vmatprep.subr.bf16.mxu0 0
        %239 = vmatpush1.bf16.msra.mxu0 0
        %240 = vmatprep.subr.bf16.mxu0 0
        %241 = vmatpush1.bf16.msra.mxu0 0
        %242 = vmatprep.subr.bf16.mxu0 0
        %243 = vmatpush1.bf16.msra.mxu0 0
        %244 = vmatprep.subr.bf16.mxu0 0
        %245 = vmatpush1.bf16.msra.mxu0 0
        %246 = vmatprep.mubr.bf16.mxu0 0
        %247 = vmatmul.mubr.bf16.gmra.mrb[0].mxu0 %v212
        %v248 = vpop.f32.mrb[0].mxu0
        %v249 = vadd.f32 0.0, %v248
        %v250 = vpop.f32.mrb[0].mxu0
        %v251 = vpop.f32.mrb[0].mxu0
        %v252 = vpop.f32.mrb[0].mxu0
        %253 = vdwg.mxu0
        %v254 = vpack.c.bf16 %v249, %v249
        %vm255 = vcmask 125952
        %256 = vst.msk [vmem:[#allocation2] sm:$0xf] %vm255, %v254
        %s257 = scalar_lea.vmem %s118, 8 [#allocation5]
        %v258 = vld [vmem:[%s257] sm:$0xf]
        %v259 = vld [vmem:[%s257 + $0x4] sm:$0xf]
        %v262 = vunpack.c.l.b16 %v258
        %v263 = vunpack.c.l.b16 %v259
        %v264 = vpack.c.b16 %v263, %v262
        %266 = vmatprep.subr.bf16.mxu0 0
        %267 = vmatpush1.bf16.msra.mxu0 %v264
        %268 = vmatprep.subr.bf16.mxu0 0
        %269 = vmatpush1.bf16.msra.mxu0 0
        %270 = vmatprep.subr.bf16.mxu0 0
        %271 = vmatpush1.bf16.msra.mxu0 0
        %272 = vmatprep.subr.bf16.mxu0 0
        %273 = vmatpush1.bf16.msra.mxu0 0
        %274 = vmatprep.subr.bf16.mxu0 0
        %275 = vmatpush1.bf16.msra.mxu0 0
        %276 = vmatprep.subr.bf16.mxu0 0
        %277 = vmatpush1.bf16.msra.mxu0 0
        %278 = vmatprep.subr.bf16.mxu0 0
        %279 = vmatpush1.bf16.msra.mxu0 0
        %280 = vmatprep.subr.bf16.mxu0 0
        %281 = vmatpush1.bf16.msra.mxu0 0
        %282 = vmatprep.subr.bf16.mxu0 0
        %283 = vmatpush1.bf16.msra.mxu0 0
        %284 = vmatprep.subr.bf16.mxu0 0
        %285 = vmatpush1.bf16.msra.mxu0 0
        %286 = vmatprep.subr.bf16.mxu0 0
        %287 = vmatpush1.bf16.msra.mxu0 0
        %288 = vmatprep.subr.bf16.mxu0 0
        %289 = vmatpush1.bf16.msra.mxu0 0
        %290 = vmatprep.subr.bf16.mxu0 0
        %291 = vmatpush1.bf16.msra.mxu0 0
        %292 = vmatprep.subr.bf16.mxu0 0
        %293 = vmatpush1.bf16.msra.mxu0 0
        %294 = vmatprep.subr.bf16.mxu0 0
        %295 = vmatpush1.bf16.msra.mxu0 0
        %296 = vmatprep.subr.bf16.mxu0 0
        %297 = vmatpush1.bf16.msra.mxu0 0
        %298 = vmatprep.mubr.bf16.mxu0 0
        %299 = vmatmul.mubr.bf16.gmra.mrb[0].mxu0 %v212
        %v300 = vpop.f32.mrb[0].mxu0
        %v301 = vadd.f32 0.0, %v300
        %v302 = vpop.f32.mrb[0].mxu0
        %v303 = vpop.f32.mrb[0].mxu0
        %v304 = vpop.f32.mrb[0].mxu0
        %305 = vdwg.mxu0
        %v306 = vpack.c.bf16 %v301, %v301
        %v308 = vrot.slane %v306, 4
        %vm310 = vcmask 130052
        %311 = vst.msk [vmem:[#allocation2] sm:$0xf0] %vm310, %v308
        %s312 = scalar_lea.vmem %s118, 16 [#allocation5]
        %v313 = vld [vmem:[%s312] sm:$0xf]
        %v314 = vld [vmem:[%s312 + $0x4] sm:$0xf]
        %v317 = vunpack.c.l.b16 %v313
        %v318 = vunpack.c.l.b16 %v314
        %v319 = vpack.c.b16 %v318, %v317
        %321 = vmatprep.subr.bf16.mxu0 0
        %322 = vmatpush1.bf16.msra.mxu0 %v319
        %323 = vmatprep.subr.bf16.mxu0 0
        %324 = vmatpush1.bf16.msra.mxu0 0
        %325 = vmatprep.subr.bf16.mxu0 0
        %326 = vmatpush1.bf16.msra.mxu0 0
        %327 = vmatprep.subr.bf16.mxu0 0
        %328 = vmatpush1.bf16.msra.mxu0 0
        %329 = vmatprep.subr.bf16.mxu0 0
        %330 = vmatpush1.bf16.msra.mxu0 0
        %331 = vmatprep.subr.bf16.mxu0 0
        %332 = vmatpush1.bf16.msra.mxu0 0
        %333 = vmatprep.subr.bf16.mxu0 0
        %334 = vmatpush1.bf16.msra.mxu0 0
        %335 = vmatprep.subr.bf16.mxu0 0
        %336 = vmatpush1.bf16.msra.mxu0 0
        %337 = vmatprep.subr.bf16.mxu0 0
        %338 = vmatpush1.bf16.msra.mxu0 0
        %339 = vmatprep.subr.bf16.mxu0 0
        %340 = vmatpush1.bf16.msra.mxu0 0
        %341 = vmatprep.subr.bf16.mxu0 0
        %342 = vmatpush1.bf16.msra.mxu0 0
        %343 = vmatprep.subr.bf16.mxu0 0
        %344 = vmatpush1.bf16.msra.mxu0 0
        %345 = vmatprep.subr.bf16.mxu0 0
        %346 = vmatpush1.bf16.msra.mxu0 0
        %347 = vmatprep.subr.bf16.mxu0 0
        %348 = vmatpush1.bf16.msra.mxu0 0
        %349 = vmatprep.subr.bf16.mxu0 0
        %350 = vmatpush1.bf16.msra.mxu0 0
        %351 = vmatprep.subr.bf16.mxu0 0
        %352 = vmatpush1.bf16.msra.mxu0 0
        %353 = vmatprep.mubr.bf16.mxu0 0
        %354 = vmatmul.mubr.bf16.gmra.mrb[0].mxu0 %v212
        %v355 = vpop.f32.mrb[0].mxu0
        %v356 = vadd.f32 0.0, %v355
        %v357 = vpop.f32.mrb[0].mxu0
        %v358 = vpop.f32.mrb[0].mxu0
        %v359 = vpop.f32.mrb[0].mxu0
        %360 = vdwg.mxu0
        %v361 = vpack.c.bf16 %v356, %v356
        %362 = vst.msk [vmem:[#allocation2 + $0x8] sm:$0xf] %vm255, %v361
        %s363 = scalar_lea.vmem %s118, 24 [#allocation5]
        %v364 = vld [vmem:[%s363] sm:$0xf]
        %v365 = vld [vmem:[%s363 + $0x4] sm:$0xf]
        %v368 = vunpack.c.l.b16 %v364
        %v369 = vunpack.c.l.b16 %v365
        %v370 = vpack.c.b16 %v369, %v368
        %372 = vmatprep.subr.bf16.mxu0 0
        %373 = vmatpush1.bf16.msra.mxu0 %v370
        %374 = vmatprep.subr.bf16.mxu0 0
        %375 = vmatpush1.bf16.msra.mxu0 0
        %376 = vmatprep.subr.bf16.mxu0 0
        %377 = vmatpush1.bf16.msra.mxu0 0
        %378 = vmatprep.subr.bf16.mxu0 0
        %379 = vmatpush1.bf16.msra.mxu0 0
        %380 = vmatprep.subr.bf16.mxu0 0
        %381 = vmatpush1.bf16.msra.mxu0 0
        %382 = vmatprep.subr.bf16.mxu0 0
        %383 = vmatpush1.bf16.msra.mxu0 0
        %384 = vmatprep.subr.bf16.mxu0 0
        %385 = vmatpush1.bf16.msra.mxu0 0
        %386 = vmatprep.subr.bf16.mxu0 0
        %387 = vmatpush1.bf16.msra.mxu0 0
        %388 = vmatprep.subr.bf16.mxu0 0
        %389 = vmatpush1.bf16.msra.mxu0 0
        %390 = vmatprep.subr.bf16.mxu0 0
        %391 = vmatpush1.bf16.msra.mxu0 0
        %392 = vmatprep.subr.bf16.mxu0 0
        %393 = vmatpush1.bf16.msra.mxu0 0
        %394 = vmatprep.subr.bf16.mxu0 0
        %395 = vmatpush1.bf16.msra.mxu0 0
        %396 = vmatprep.subr.bf16.mxu0 0
        %397 = vmatpush1.bf16.msra.mxu0 0
        %398 = vmatprep.subr.bf16.mxu0 0
        %399 = vmatpush1.bf16.msra.mxu0 0
        %400 = vmatprep.subr.bf16.mxu0 0
        %401 = vmatpush1.bf16.msra.mxu0 0
        %402 = vmatprep.subr.bf16.mxu0 0
        %403 = vmatpush1.bf16.msra.mxu0 0
        %404 = vmatprep.mubr.bf16.mxu0 0
        %405 = vmatmul.mubr.bf16.gmra.mrb[0].mxu0 %v212
        %v406 = vpop.f32.mrb[0].mxu0
        %v407 = vadd.f32 0.0, %v406
        %v408 = vpop.f32.mrb[0].mxu0
        %v409 = vpop.f32.mrb[0].mxu0
        %v410 = vpop.f32.mrb[0].mxu0
        %411 = vdwg.mxu0
        %v412 = vpack.c.bf16 %v407, %v407
        %v414 = vrot.slane %v412, 4
        %416 = vst.msk [vmem:[#allocation2 + $0x8] sm:$0xf0] %vm310, %v414
        %v417 = vld [vmem:[#allocation2] sm:$0xff]
        %v418 = vld [vmem:[#allocation2 + $0x8] sm:$0xff]
        %v420 = vsel %vm210, %v417, 0
        %v423 = vsel %vm210, %v418, 0
        %425 = vmatprep.subr.bf16.mxu0 0
        %426 = vmatpush1.bf16.msra.mxu0 %v201
        %427 = vmatprep.subr.bf16.mxu0 0
        %428 = vmatpush1.bf16.msra.mxu0 0
        %429 = vmatprep.subr.bf16.mxu0 0
        %430 = vmatpush1.bf16.msra.mxu0 0
        %431 = vmatprep.subr.bf16.mxu0 0
        %432 = vmatpush1.bf16.msra.mxu0 0
        %433 = vmatprep.subr.bf16.mxu0 0
        %434 = vmatpush1.bf16.msra.mxu0 0
        %435 = vmatprep.subr.bf16.mxu0 0
        %436 = vmatpush1.bf16.msra.mxu0 0
        %437 = vmatprep.subr.bf16.mxu0 0
        %438 = vmatpush1.bf16.msra.mxu0 0
        %439 = vmatprep.subr.bf16.mxu0 0
        %440 = vmatpush1.bf16.msra.mxu0 0
        %441 = vmatprep.subr.bf16.mxu0 0
        %442 = vmatpush1.bf16.msra.mxu0 0
        %443 = vmatprep.subr.bf16.mxu0 0
        %444 = vmatpush1.bf16.msra.mxu0 0
        %445 = vmatprep.subr.bf16.mxu0 0
        %446 = vmatpush1.bf16.msra.mxu0 0
        %447 = vmatprep.subr.bf16.mxu0 0
        %448 = vmatpush1.bf16.msra.mxu0 0
        %449 = vmatprep.subr.bf16.mxu0 0
        %450 = vmatpush1.bf16.msra.mxu0 0
        %451 = vmatprep.subr.bf16.mxu0 0
        %452 = vmatpush1.bf16.msra.mxu0 0
        %453 = vmatprep.subr.bf16.mxu0 0
        %454 = vmatpush1.bf16.msra.mxu0 0
        %455 = vmatprep.subr.bf16.mxu0 0
        %456 = vmatpush1.bf16.msra.mxu0 0
        %457 = vmatprep.mubr.bf16.mxu0 0
        %458 = vmatmul.mubr.bf16.gmra.mrb[0].mxu0 %v420
        %v459 = vpop.f32.mrb[0].mxu0
        %v460 = vadd.f32 0.0, %v459
        %v461 = vpop.f32.mrb[0].mxu0
        %v462 = vpop.f32.mrb[0].mxu0
        %v463 = vadd.f32 0.0, %v462
        %v464 = vpop.f32.mrb[0].mxu0
        %465 = vmatprep.mubr.bf16.mxu0 0
        %466 = vmatmul.mubr.bf16.gmra.mrb[0].mxu0 %v423
        %v467 = vpop.f32.mrb[0].mxu0
        %v468 = vadd.f32 0.0, %v467
        %v469 = vpop.f32.mrb[0].mxu0
        %v470 = vpop.f32.mrb[0].mxu0
        %v471 = vadd.f32 0.0, %v470
        %v472 = vpop.f32.mrb[0].mxu0
        %473 = vdwg.mxu0
        %v474 = vpack.c.bf16 %v463, %v460
        %v475 = vpack.c.bf16 %v471, %v468
        %v478 = vunpack.c.l.b16 %v474
        %v479 = vunpack.c.h.b16 %v474
        %v480 = vunpack.c.l.b16 %v475
        %v481 = vunpack.c.h.b16 %v475
        %v482 = vpack.c.b16 %v478, %v478
        %v483 = vpack.c.b16 %v479, %v479
        %v484 = vpack.c.b16 %v480, %v480
        %v485 = vpack.c.b16 %v481, %v481
        %vm490 = vcmask 60416
        %491 = vst.msk [vmem:[%s141] sm:$0xf] %vm490, %v482
        %492 = vst.msk [vmem:[%s141 + $0x4] sm:$0xf] %vm490, %v483
        %493 = vst.msk [vmem:[%s141 + $0x8] sm:$0xf] %vm490, %v484
        %494 = vst.msk [vmem:[%s141 + $0xc] sm:$0xf] %vm490, %v485
        %p495 = scmp.lt.s32.totalorder %s20, 1
        %s496 = scalar_select %p495, %s20, 1
        %s497 = smul.addr %s496, 4
        %s498 = smul.addr %s497, 4
        %s499 = scalar_lea.vmem %s2, %s498
        // Predicated region
        $region29: #{tpu_custom_call.1} parent=23 // pred_check
          %p500 = pneg %p64
        $region30: #{tpu_custom_call.1} parent=23 // pred_check_branch
          %502 = sbr.rel (%p500) target = $region32
        $region31: #{tpu_custom_call.1} parent=23 // pred_region
          _
        $region32: #{tpu_custom_call.1} parent=23 // pred_fallthru
          _
      $region24: #{tpu_custom_call.1} parent=5 // pred_fallthru
        _
      %p503 = scmp.le.s32.totalorder 2, %s15
      // Predicated region
      $region33: #{tpu_custom_call.1} parent=5 // pred_check
        %p504 = pneg %p503
      $region34: #{tpu_custom_call.1} parent=5 // pred_check_branch
        %506 = sbr.rel (%p504) target = $region36
      $region35: #{tpu_custom_call.1} parent=5 // pred_region
        %s507 = ssub.s32 %s15, 2
        // Predicated region
        $region37: #{tpu_custom_call.1} parent=35 // pred_check
          %p508 = pneg %p70
        $region38: #{tpu_custom_call.1} parent=35 // pred_check_branch
          %510 = sbr.rel (%p508) target = $region40
        $region39: #{tpu_custom_call.1} parent=35 // pred_region
          %p511 = scmp.lt.s32.totalorder %s21, 1
          %s512 = scalar_select %p511, %s21, 1
          %s513 = smul.addr %s512, 4
          %s514 = smul.addr %s513, 4
          %s515 = scalar_lea.vmem %s2, %s514
        $region40: #{tpu_custom_call.1} parent=35 // pred_fallthru
          _
      $region36: #{tpu_custom_call.1} parent=5 // pred_fallthru
        _
    $region6: #{tpu_custom_call.1} parent=1 // loop_footer
      %s19 = sadd.s32 1, %s15
    $region7: #{tpu_custom_call.1} parent=1 // loop_footer_branch
      %14 = sbr.rel target = $region3
    $region8: #{tpu_custom_call.1} parent=1 // loop_exit
      _
    %516 = vsyncpa [#allocation6], 1
    %s517 = scalar_lea.sflag [#allocation6], 1
    %518 = vsyncpa %s517, 1

</llo_original>
